<compile_context>
chip_gen: v5e
topology: v5e:2x2
jax: 0.10.0
libtpu: 0.0.40
codegen_flags: <defaults>
</compile_context>

<pallas_src>
import functools

import jax
import jax.numpy as jnp
import numpy as np
from jax.experimental import pallas as pl
from jax.experimental.pallas import tpu as pltpu


def _vmem_limits():
    """Generation-aware scoped-VMEM request + usable tiling budget (bytes)."""
    phys = None
    try:
        phys = getattr(pltpu.get_tpu_info(), "vmem_capacity_bytes", None)
    except Exception:
        phys = None
    if phys is not None and phys > 64 * 1024 * 1024:
        limit = 64 * 1024 * 1024          # v5e / v6e: 128 MiB physical VMEM
    else:
        limit = 48 * 1024 * 1024          # v7x (64 MiB physical) or unknown
    budget = (limit * 3) // 4             # headroom for compiler-internal scratch
    return limit, budget


def _choose_tile_h(H, W, radius, itemsize, budget, pad, max_tile_h=None):
    """Pick the row-strip height T (and a possibly padded H) for the grid."""
    # Per-row VMEM footprint: double-buffered body + out blocks, the f32
    # window scratch and ~4 live full-width f32 temporaries.
    bytes_per_row = max(W, 1) * (4 * itemsize + 20)
    cap = max(pad, budget // bytes_per_row)
    cap = min(cap, 1024)                  # per-strip overhead is negligible beyond this
    if max_tile_h is not None:
        cap = min(cap, max(int(max_tile_h), 1))
    if H <= cap:
        return H, H                       # single strip: whole image resident in VMEM

    align = pad if itemsize >= 4 else max(pad, 16)      # bf16: 16-row alignment
    t_min = align * (-(-(radius + 1) // align))          # reflect fill needs T >= r+1
    cap_al = max((cap // align) * align, t_min)
    for t in range(cap_al, t_min - 1, -align):
        if H % t == 0:
            return t, H
    # Awkward H (e.g. prime): pad rows so every strip is full and aligned; the
    # pad rows are reflect-filled in the wrapper and sliced off afterwards.
    t = cap_al
    Hp = -(-(H + radius) // t) * t
    return t, Hp


def _box_blur_kernel(*refs, T, W, radius, PAD, multi_strip):
    """One self-contained row strip: window assembly + separable box sum."""
    if multi_strip:
        body_ref, top_ref, bot_ref, o_ref, win = refs
    else:
        body_ref, o_ref, win = refs
        top_ref = bot_ref = None

    K = 2 * radius + 1
    inv = np.float32(1.0 / float(K * K))          # compile-time constant weight
    i = pl.program_id(0)
    n = pl.num_programs(0)

    # ---- assemble the (T + 2r)-row f32 window in VMEM scratch ----
    win[PAD:PAD + T, :] = body_ref[...].astype(jnp.float32)      # aligned body copy
    for m in range(radius):
        # top halo window row <-> global row base - radius + m
        r_top = PAD - radius + m
        refl_t = body_ref[radius - m:radius - m + 1, :].astype(jnp.float32)
        if multi_strip:
            halo_t = top_ref[r_top:r_top + 1, :].astype(jnp.float32)
            win[r_top:r_top + 1, :] = jnp.where(i == 0, refl_t, halo_t)
        else:
            win[r_top:r_top + 1, :] = refl_t

        # bottom halo window row <-> global row base + T + m
        r_bot = PAD + T + m
        refl_b = body_ref[T - 2 - m:T - 1 - m, :].astype(jnp.float32)
        if multi_strip:
            halo_b = bot_ref[m:m + 1, :].astype(jnp.float32)
            win[r_bot:r_bot + 1, :] = jnp.where(i == n - 1, refl_b, halo_b)
        else:
            win[r_bot:r_bot + 1, :] = refl_b

    # ---- vertical K-tap sum: shifted sublane reads of the window ----
    base = PAD - radius
    v = win[base:base + T, :]
    for k in range(1, K):
        v = v + win[base + k:base + k + T, :]

    # ---- horizontal K-tap sum: wrapped XLU lane rolls ----
    h = v
    for d in range(1, radius + 1):
        h = h + pltpu.roll(v, d, axis=1) + pltpu.roll(v, W - d, axis=1)
    o_ref[...] = (h * inv).astype(o_ref.dtype)

    # ---- exact reflect fix for the 2r edge columns (tiny (T,1) stores) ----
    for c in list(range(radius)) + list(range(W - radius, W)):
        acc = None
        for d in range(-radius, radius + 1):
            j = c + d
            if j < 0:
                j = -j
            elif j > W - 1:
                j = 2 * (W - 1) - j
            col = v[:, j:j + 1]
            acc = col if acc is None else acc + col
        o_ref[:, c:c + 1] = (acc * inv).astype(o_ref.dtype)


def box_blur_2d(x: jax.Array, radius: int = 1, *, max_tile_h=None) -> jax.Array:
    """Forward pass of SmoothingFilter: normalized box blur, reflect border."""
    radius = int(radius)
    if radius == 0:
        return x
    if x.ndim != 2:
        raise ValueError("box_blur_2d expects a 2D image (H, W)")
    H, W = x.shape
    if H <= radius or W <= radius:
        raise ValueError("reflect padding requires every spatial dim > radius")
    if W < 2 * radius:
        raise ValueError("kernel requires W >= 2*radius")

    limit, budget = _vmem_limits()
    PAD = 8 * (-(-radius // 8))                       # halo rows, sublane-aligned
    T, Hp = _choose_tile_h(H, W, radius, x.dtype.itemsize, budget, PAD, max_tile_h)

    x_in = x
    if Hp != H:
        # Reflect-pad rows so every strip is full; padded outputs are sliced off.
        pad_rows = Hp - H
        p_ref = min(pad_rows, H - 1)
        x_in = jnp.pad(x, ((0, p_ref), (0, 0)), mode="reflect")
        if pad_rows > p_ref:
            x_in = jnp.pad(x_in, ((0, pad_rows - p_ref), (0, 0)), mode="edge")

    S = Hp // T
    multi = S > 1
    kernel = functools.partial(_box_blur_kernel, T=T, W=W, radius=radius,
                               PAD=PAD, multi_strip=multi)

    if multi:
        nb = T // PAD                                 # halo blocks per strip
        hb_last = Hp // PAD - 1
        in_specs = [
            pl.BlockSpec((T, W), lambda i: (i, 0)),                                    # body
            pl.BlockSpec((PAD, W), lambda i: (jnp.maximum(i * nb - 1, 0), 0)),         # rows above
            pl.BlockSpec((PAD, W), lambda i: (jnp.minimum((i + 1) * nb, hb_last), 0)),  # rows below
        ]
        args = (x_in, x_in, x_in)
    else:
        in_specs = [pl.BlockSpec((T, W), lambda i: (i, 0))]
        args = (x_in,)

    out = pl.pallas_call(
        kernel,
        out_shape=jax.ShapeDtypeStruct((Hp, W), x.dtype),
        grid_spec=pltpu.PrefetchScalarGridSpec(
            num_scalar_prefetch=0,
            grid=(S,),
            in_specs=in_specs,
            out_specs=pl.BlockSpec((T, W), lambda i: (i, 0)),
            scratch_shapes=[pltpu.VMEM((2 * PAD + T, W), jnp.float32)],   # window
        ),
        compiler_params=pltpu.CompilerParams(
            dimension_semantics=("parallel",),        # self-contained strips: megacore-safe
            vmem_limit_bytes=limit,
        ),
    )(*args)

    if Hp != H:
        out = out[:H]
    return out


class SmoothingFilter:
    """JAX/Pallas counterpart of the PyTorch SmoothingFilter module."""

    def __init__(self, radius: int = 1):
        self.radius = radius

    def __call__(self, x: jax.Array) -> jax.Array:
        return box_blur_2d(x, radius=self.radius)

    def update_params(self, scaler):
        # NOTE: like the PyTorch module, a non-integer scaler changes the
        # effective kernel size only after int() truncation in the forward.
        self.radius = self.radius * scaler

    def reset_params(self, radius: int = 1):
        self.radius = radius


def _reference_box_blur(x: jax.Array, radius: int = 1) -> jax.Array:
    """Pure-JAX reference (same math as kornia.box_blur, reflect border)."""
    K = 2 * radius + 1
    H, W = x.shape
    xpad = jnp.pad(x, radius, mode="reflect")
    acc = jnp.zeros((H, W), jnp.float32)
    for di in range(K):
        for dj in range(K):
            acc = acc + xpad[di:di + H, dj:dj + W].astype(jnp.float32)
    return (acc * (1.0 / (K * K))).astype(x.dtype)


if __name__ == "__main__":
    key = jax.random.PRNGKey(0)
    k1, k2, k3 = jax.random.split(key, 3)

    # Multi-strip case (4 strips of 64 rows): reflected halos on the first and
    # last strips, prefetched halo blocks on interior strips, parallel grid.
    x1 = jax.random.normal(k1, (256, 256), dtype=jnp.float32)
    y1 = jax.block_until_ready(box_blur_2d(x1, radius=1, max_tile_h=64))
    r1 = jax.block_until_ready(_reference_box_blur(x1, radius=1))
    assert y1.shape == x1.shape and y1.dtype == x1.dtype
    np.testing.assert_allclose(np.asarray(y1), np.asarray(r1),
                               rtol=1e-5, atol=1e-5)

    # Single-strip fast path (whole image resident in VMEM) via the wrapper.
    filt = SmoothingFilter(radius=1)
    x2 = jax.random.normal(k2, (40, 128), dtype=jnp.float32)
    y2 = jax.block_until_ready(filt(x2))
    r2 = jax.block_until_ready(_reference_box_blur(x2, radius=1))
    np.testing.assert_allclose(np.asarray(y2), np.asarray(r2),
                               rtol=1e-5, atol=1e-5)

    # radius=2 multi-strip: exercises multi-row halos and edge-column fixes.
    x3 = jax.random.normal(k3, (128, 256), dtype=jnp.float32)
    y3 = jax.block_until_ready(box_blur_2d(x3, radius=2, max_tile_h=32))
    r3 = jax.block_until_ready(_reference_box_blur(x3, radius=2))
    np.testing.assert_allclose(np.asarray(y3), np.asarray(r3),
                               rtol=1e-5, atol=1e-5)

    print("KERNEL_OK")
</pallas_src>

<mosaic_0001>
module attributes {stable_mosaic.version = 11 : i64} {
  func.func @_box_blur_kernel(%arg0: i32, %arg1: memref<64x256xf32, #tpu.memory_space<vmem>>, %arg2: memref<8x256xf32, #tpu.memory_space<vmem>>, %arg3: memref<8x256xf32, #tpu.memory_space<vmem>>, %arg4: memref<64x256xf32, #tpu.memory_space<vmem>>, %arg5: memref<80x256xf32, #tpu.memory_space<vmem>>) attributes {dimension_semantics = [#tpu.dimension_semantics<parallel>], iteration_bounds = array<i64: 4>, scalar_prefetch = 0 : i64, scratch_operands = 1 : i64, tpu.core_type = #tpu.core_type<tc>, window_params = [{transform_indices = @transform_0, window_bounds = array<i64: 64, 256>}, {transform_indices = @transform_1, window_bounds = array<i64: 8, 256>}, {transform_indices = @transform_2, window_bounds = array<i64: 8, 256>}, {transform_indices = @transform_3, window_bounds = array<i64: 64, 256>}]} {
    %c0 = arith.constant 0 : index
    %c0_0 = arith.constant 0 : index
    %0 = vector.load %arg1[%c0, %c0_0] : memref<64x256xf32, #tpu.memory_space<vmem>>, vector<64x256xf32>
    %c8 = arith.constant 8 : index
    %c0_1 = arith.constant 0 : index
    %1 = vector.load %arg5[%c8, %c0_1] : memref<80x256xf32, #tpu.memory_space<vmem>>, vector<64x256xf32>
    tpu.vector_store %arg5[%c8, %c0_1], %0 {strides = array<i32>} : memref<80x256xf32, #tpu.memory_space<vmem>>, vector<64x256xf32>,
    %c1 = arith.constant 1 : index
    %c0_2 = arith.constant 0 : index
    %2 = vector.load %arg1[%c1, %c0_2] : memref<64x256xf32, #tpu.memory_space<vmem>>, vector<1x256xf32>
    %c7 = arith.constant 7 : index
    %c0_3 = arith.constant 0 : index
    %3 = vector.load %arg2[%c7, %c0_3] : memref<8x256xf32, #tpu.memory_space<vmem>>, vector<1x256xf32>
    %c0_i32 = arith.constant 0 : i32
    %4 = arith.cmpi eq, %arg0, %c0_i32 : i32
    %5 = arith.select %4, %2, %3 : vector<1x256xf32>
    %c7_4 = arith.constant 7 : index
    %c0_5 = arith.constant 0 : index
    %6 = vector.load %arg5[%c7_4, %c0_5] : memref<80x256xf32, #tpu.memory_space<vmem>>, vector<1x256xf32>
    tpu.vector_store %arg5[%c7_4, %c0_5], %5 {strides = array<i32>} : memref<80x256xf32, #tpu.memory_space<vmem>>, vector<1x256xf32>,
    %c62 = arith.constant 62 : index
    %c0_6 = arith.constant 0 : index
    %7 = vector.load %arg1[%c62, %c0_6] : memref<64x256xf32, #tpu.memory_space<vmem>>, vector<1x256xf32>
    %c0_7 = arith.constant 0 : index
    %c0_8 = arith.constant 0 : index
    %8 = vector.load %arg3[%c0_7, %c0_8] : memref<8x256xf32, #tpu.memory_space<vmem>>, vector<1x256xf32>
    %c3_i32 = arith.constant 3 : i32
    %9 = arith.cmpi eq, %arg0, %c3_i32 : i32
    %10 = arith.select %9, %7, %8 : vector<1x256xf32>
    %c72 = arith.constant 72 : index
    %c0_9 = arith.constant 0 : index
    %11 = vector.load %arg5[%c72, %c0_9] : memref<80x256xf32, #tpu.memory_space<vmem>>, vector<1x256xf32>
    tpu.vector_store %arg5[%c72, %c0_9], %10 {strides = array<i32>} : memref<80x256xf32, #tpu.memory_space<vmem>>, vector<1x256xf32>,
    %c7_10 = arith.constant 7 : index
    %c0_11 = arith.constant 0 : index
    %12 = vector.load %arg5[%c7_10, %c0_11] : memref<80x256xf32, #tpu.memory_space<vmem>>, vector<64x256xf32>
    %c8_12 = arith.constant 8 : index
    %c0_13 = arith.constant 0 : index
    %13 = vector.load %arg5[%c8_12, %c0_13] : memref<80x256xf32, #tpu.memory_space<vmem>>, vector<64x256xf32>
    %14 = arith.addf %12, %13 : vector<64x256xf32>
    %c9 = arith.constant 9 : index
    %c0_14 = arith.constant 0 : index
    %15 = vector.load %arg5[%c9, %c0_14] : memref<80x256xf32, #tpu.memory_space<vmem>>, vector<64x256xf32>
    %16 = arith.addf %14, %15 : vector<64x256xf32>
    %c1_i32 = arith.constant 1 : i32
    %17 = tpu.dynamic_rotate %16 by %c1_i32 dim 1 : vector<64x256xf32>, i32 -> vector<64x256xf32>
    %18 = arith.addf %16, %17 : vector<64x256xf32>
    %c255_i32 = arith.constant 255 : i32
    %19 = tpu.dynamic_rotate %16 by %c255_i32 dim 1 : vector<64x256xf32>, i32 -> vector<64x256xf32>
    %20 = arith.addf %18, %19 : vector<64x256xf32>
    %cst = arith.constant 0.111111112 : f32
    %21 = vector.broadcast %cst : f32 to vector<64x256xf32>
    %22 = arith.mulf %20, %21 : vector<64x256xf32>
    %c0_15 = arith.constant 0 : index
    %c0_16 = arith.constant 0 : index
    %23 = vector.load %arg4[%c0_15, %c0_16] : memref<64x256xf32, #tpu.memory_space<vmem>>, vector<64x256xf32>
    tpu.vector_store %arg4[%c0_15, %c0_16], %22 {strides = array<i32>} : memref<64x256xf32, #tpu.memory_space<vmem>>, vector<64x256xf32>,
    %24 = vector.extract_strided_slice %16 {offsets = [0, 1], sizes = [64, 1], strides = [1, 1]} : vector<64x256xf32> to vector<64x1xf32>
    %25 = vector.extract_strided_slice %16 {offsets = [0, 0], sizes = [64, 1], strides = [1, 1]} : vector<64x256xf32> to vector<64x1xf32>
    %26 = arith.addf %24, %25 : vector<64x1xf32>
    %27 = vector.extract_strided_slice %16 {offsets = [0, 1], sizes = [64, 1], strides = [1, 1]} : vector<64x256xf32> to vector<64x1xf32>
    %28 = arith.addf %26, %27 : vector<64x1xf32>
    %cst_17 = arith.constant 0.111111112 : f32
    %29 = vector.broadcast %cst_17 : f32 to vector<64x1xf32>
    %30 = arith.mulf %28, %29 : vector<64x1xf32>
    %c0_18 = arith.constant 0 : index
    %c0_19 = arith.constant 0 : index
    %31 = vector.load %arg4[%c0_18, %c0_19] : memref<64x256xf32, #tpu.memory_space<vmem>>, vector<64x1xf32>
    tpu.vector_store %arg4[%c0_18, %c0_19], %30 {strides = array<i32>} : memref<64x256xf32, #tpu.memory_space<vmem>>, vector<64x1xf32>,
    %32 = vector.extract_strided_slice %16 {offsets = [0, 254], sizes = [64, 1], strides = [1, 1]} : vector<64x256xf32> to vector<64x1xf32>
    %33 = vector.extract_strided_slice %16 {offsets = [0, 255], sizes = [64, 1], strides = [1, 1]} : vector<64x256xf32> to vector<64x1xf32>
    %34 = arith.addf %32, %33 : vector<64x1xf32>
    %35 = vector.extract_strided_slice %16 {offsets = [0, 254], sizes = [64, 1], strides = [1, 1]} : vector<64x256xf32> to vector<64x1xf32>
    %36 = arith.addf %34, %35 : vector<64x1xf32>
    %cst_20 = arith.constant 0.111111112 : f32
    %37 = vector.broadcast %cst_20 : f32 to vector<64x1xf32>
    %38 = arith.mulf %36, %37 : vector<64x1xf32>
    %c0_21 = arith.constant 0 : index
    %c255 = arith.constant 255 : index
    %39 = vector.load %arg4[%c0_21, %c255] : memref<64x256xf32, #tpu.memory_space<vmem>>, vector<64x1xf32>
    tpu.vector_store %arg4[%c0_21, %c255], %38 {strides = array<i32>} : memref<64x256xf32, #tpu.memory_space<vmem>>, vector<64x1xf32>,
    return
  }
  func.func @transform_0(%arg0: i32) -> (i32, i32) {
    %c0_i32 = arith.constant 0 : i32
    %c0_i32_0 = arith.constant 0 : i32
    return %arg0, %c0_i32 : i32, i32
  }
  func.func @transform_1(%arg0: i32) -> (i32, i32) {
    %c8_i32 = arith.constant 8 : i32
    %0 = arith.muli %arg0, %c8_i32 : i32
    %c1_i32 = arith.constant 1 : i32
    %1 = arith.subi %0, %c1_i32 : i32
    %c0_i32 = arith.constant 0 : i32
    %2 = arith.maxsi %1, %c0_i32 : i32
    %c0_i32_0 = arith.constant 0 : i32
    %c0_i32_1 = arith.constant 0 : i32
    return %2, %c0_i32_0 : i32, i32
  }
  func.func @transform_2(%arg0: i32) -> (i32, i32) {
    %c1_i32 = arith.constant 1 : i32
    %0 = arith.addi %arg0, %c1_i32 : i32
    %c8_i32 = arith.constant 8 : i32
    %1 = arith.muli %0, %c8_i32 : i32
    %c31_i32 = arith.constant 31 : i32
    %2 = arith.minsi %1, %c31_i32 : i32
    %c0_i32 = arith.constant 0 : i32
    %c0_i32_0 = arith.constant 0 : i32
    return %2, %c0_i32 : i32, i32
  }
  func.func @transform_3(%arg0: i32) -> (i32, i32) {
    %c0_i32 = arith.constant 0 : i32
    %c0_i32_0 = arith.constant 0 : i32
    return %arg0, %c0_i32 : i32, i32
  }
}

</mosaic_0001>

<llo_original>
// kernel: tpu_custom_call.1
$region0: #{tpu_custom_call.1}
  #allocation0 [shape = 'u32[]', space=smem, size = 0x4, offset = 0x4, fixed_abs, tag = 'smem constant byte address 0x4 - core index']
  #allocation1 [shape = 'u32[72,128]{1,0:T(1,128)}', space=vmem, size = 0x9000, scoped, tag = 'internal scratch']
  #allocation2 [shape = 'f32[80,256]{1,0:T(8,128)}', space=vmem, size = 0x14000, scoped, tag = 'scratch operand']
  %s0 = inlined_call_operand.hbm [shape: f32[256,256], index: 0, kind: input, shape index: {}]
  %s1 = inlined_call_operand.hbm [shape: f32[256,256], index: 1, kind: input, shape index: {}]
  %s2 = inlined_call_operand.hbm [shape: f32[256,256], index: 2, kind: input, shape index: {}]
  %s3 = inlined_call_operand.hbm [shape: f32[256,256], index: 3, kind: output, shape index: {}]
  %s4 = sld [smem:[#allocation0]]
  $region57: #{tpu_custom_call.1} parent=0
    _
  %s6 = ssub.s32 1, %s4
  %s7 = scalar_select 0, %s6, %s4
  $region1: #{tpu_custom_call.1} parent=0
    #allocation3 [shape = 'u8[131072]{0}', space=vmem, size = 0x20000, scoped, tag = 'input window, operand 0']
    #allocation4 [shape = 's32[2]{0}', space=sflag, size = 0x8, scoped, tag = 'scoped memory for tpu_custom_call.1']
    #allocation5 [shape = 's32[2]{0}', space=sflag, size = 0x8, scoped, tag = 'scoped memory for tpu_custom_call.1']
    #allocation6 [shape = 'u8[16384]{0}', space=vmem, size = 0x4000, scoped, tag = 'input window, operand 1']
    #allocation7 [shape = 's32[2]{0}', space=sflag, size = 0x8, scoped, tag = 'scoped memory for tpu_custom_call.1']
    #allocation8 [shape = 'u8[16384]{0}', space=vmem, size = 0x4000, scoped, tag = 'input window, operand 2']
    #allocation9 [shape = 'u8[131072]{0}', space=vmem, size = 0x20000, scoped, tag = 'output window, operand 0']
    %8 = vsyncpa [#allocation4], 0
    %s9 = scalar_lea.sflag [#allocation4], 1
    %10 = vsyncpa %s9, 0
    %11 = vsyncpa [#allocation7], 0
    %s12 = scalar_lea.sflag [#allocation7], 1
    %13 = vsyncpa %s12, 0
    %14 = vsyncpa [#allocation5], 0
    %s15 = scalar_lea.sflag [#allocation5], 1
    %16 = vsyncpa %s15, 0
    loop: start=0, step=1, limit=6
    $region2: #{tpu_custom_call.1} parent=1 // loop_pre_header
      _
    $region3: #{tpu_custom_call.1} parent=1 // loop_header
      %s18 = sphi 0, %s22
      %p19 = scmp.ge.s32.totalorder %s18, 6
      %s28 = sphi 0, %s30
      %s31 = sphi 0, %s28
      %s32 = sphi 0, %s31
      %s48 = sphi 0, %s32
      %s62 = sphi 0, %s64
      %s65 = sphi 0, %s62
      %s66 = sphi 0, %s65
      %s82 = sphi 0, %s66
      %s96 = sphi 0, %s98
      %s99 = sphi 0, %s96
      %s100 = sphi 0, %s99
      %s116 = sphi 0, %s100
      %s122 = sphi 0, %s124
      %s125 = sphi 0, %s122
      %s126 = sphi 0, %s125
      %s142 = sphi 0, %s126
    $region4: #{tpu_custom_call.1} parent=1 // loop_header_branch
      %21 = sbr.rel (%p19) target = $region8
    $region5: #{tpu_custom_call.1} parent=1 // loop_body
      %s23 = ssub.s32 %s18, 1
      %s24 = ssub.s32 %s18, 2
      %s25 = sadd.s32 %s18, 1
      %s26 = ssub.s32 %s18, %s25
      %p27 = scmp.eq.s32.totalorder %s26, 0
      %s29 = sadd.s32 %s28, 1
      %s30 = scalar_select %p27, %s28, %s29
      %p33 = pneg %p27
      %p34 = scmp.eq.s32.totalorder %s18, 3
      %p35 = por %p33, %p34
      %p36 = scmp.ne.s32.totalorder %s28, %s31
      %p37 = scmp.eq.s32.totalorder %s18, 0
      %p38 = por %p36, %p37
      %p39 = scmp.ne.s32.totalorder %s28, %s31
      %p40 = scmp.eq.s32.totalorder %s23, 3
      %p41 = por %p39, %p40
      %p42 = scmp.ne.s32.totalorder %s31, %s32
      %p43 = scmp.eq.s32.totalorder %s23, 0
      %p44 = por %p42, %p43
      %p45 = scmp.ne.s32.totalorder %s31, %s32
      %p46 = scmp.eq.s32.totalorder %s24, 3
      %p47 = por %p45, %p46
      %p49 = scmp.ne.s32.totalorder %s32, %s48
      %p50 = scmp.eq.s32.totalorder %s24, 0
      %p51 = por %p49, %p50
      %s52 = smul.u32 %s18, 8
      %s53 = ssub.s32 %s52, 1
      %p54 = scmp.gt.s32.totalorder %s53, 0
      %s55 = scalar_select %p54, %s53, 0
      %s56 = smul.u32 %s25, 8
      %s57 = ssub.s32 %s56, 1
      %p58 = scmp.gt.s32.totalorder %s57, 0
      %s59 = scalar_select %p58, %s57, 0
      %s60 = ssub.s32 %s55, %s59
      %p61 = scmp.eq.s32.totalorder %s60, 0
      %s63 = sadd.s32 %s62, 1
      %s64 = scalar_select %p61, %s62, %s63
      %p67 = pneg %p61
      %p68 = scmp.eq.s32.totalorder %s18, 3
      %p69 = por %p67, %p68
      %p70 = scmp.ne.s32.totalorder %s62, %s65
      %p71 = scmp.eq.s32.totalorder %s18, 0
      %p72 = por %p70, %p71
      %p73 = scmp.ne.s32.totalorder %s62, %s65
      %p74 = scmp.eq.s32.totalorder %s23, 3
      %p75 = por %p73, %p74
      %p76 = scmp.ne.s32.totalorder %s65, %s66
      %p77 = scmp.eq.s32.totalorder %s23, 0
      %p78 = por %p76, %p77
      %p79 = scmp.ne.s32.totalorder %s65, %s66
      %p80 = scmp.eq.s32.totalorder %s24, 3
      %p81 = por %p79, %p80
      %p83 = scmp.ne.s32.totalorder %s66, %s82
      %p84 = scmp.eq.s32.totalorder %s24, 0
      %p85 = por %p83, %p84
      %s86 = sadd.s32 %s18, 1
      %s87 = smul.u32 %s86, 8
      %p88 = scmp.lt.s32.totalorder %s87, 31
      %s89 = scalar_select %p88, %s87, 31
      %s90 = sadd.s32 %s25, 1
      %s91 = smul.u32 %s90, 8
      %p92 = scmp.lt.s32.totalorder %s91, 31
      %s93 = scalar_select %p92, %s91, 31
      %s94 = ssub.s32 %s89, %s93
      %p95 = scmp.eq.s32.totalorder %s94, 0
      %s97 = sadd.s32 %s96, 1
      %s98 = scalar_select %p95, %s96, %s97
      %p101 = pneg %p95
      %p102 = scmp.eq.s32.totalorder %s18, 3
      %p103 = por %p101, %p102
      %p104 = scmp.ne.s32.totalorder %s96, %s99
      %p105 = scmp.eq.s32.totalorder %s18, 0
      %p106 = por %p104, %p105
      %p107 = scmp.ne.s32.totalorder %s96, %s99
      %p108 = scmp.eq.s32.totalorder %s23, 3
      %p109 = por %p107, %p108
      %p110 = scmp.ne.s32.totalorder %s99, %s100
      %p111 = scmp.eq.s32.totalorder %s23, 0
      %p112 = por %p110, %p111
      %p113 = scmp.ne.s32.totalorder %s99, %s100
      %p114 = scmp.eq.s32.totalorder %s24, 3
      %p115 = por %p113, %p114
      %p117 = scmp.ne.s32.totalorder %s100, %s116
      %p118 = scmp.eq.s32.totalorder %s24, 0
      %p119 = por %p117, %p118
      %s120 = ssub.s32 %s18, %s25
      %p121 = scmp.eq.s32.totalorder %s120, 0
      %s123 = sadd.s32 %s122, 1
      %s124 = scalar_select %p121, %s122, %s123
      %p127 = pneg %p121
      %p128 = scmp.eq.s32.totalorder %s18, 3
      %p129 = por %p127, %p128
      %p130 = scmp.ne.s32.totalorder %s122, %s125
      %p131 = scmp.eq.s32.totalorder %s18, 0
      %p132 = por %p130, %p131
      %p133 = scmp.ne.s32.totalorder %s122, %s125
      %p134 = scmp.eq.s32.totalorder %s23, 3
      %p135 = por %p133, %p134
      %p136 = scmp.ne.s32.totalorder %s125, %s126
      %p137 = scmp.eq.s32.totalorder %s23, 0
      %p138 = por %p136, %p137
      %p139 = scmp.ne.s32.totalorder %s125, %s126
      %p140 = scmp.eq.s32.totalorder %s24, 3
      %p141 = por %p139, %p140
      %p143 = scmp.ne.s32.totalorder %s126, %s142
      %p144 = scmp.eq.s32.totalorder %s24, 0
      %p145 = por %p143, %p144
      %p146 = scmp.le.s32.totalorder 1, %s18
      %p147 = scmp.lt.s32.totalorder %s18, 5
      %p148 = pnand %p146, %p147
      %p149 = pneg %p148
      // Predicated region
      $region9: #{tpu_custom_call.1} parent=5 // pred_check
        _
      $region10: #{tpu_custom_call.1} parent=5 // pred_check_branch
        %151 = sbr.rel (%p148) target = $region12
      $region11: #{tpu_custom_call.1} parent=5 // pred_region
        %s152 = ssub.s32 %s18, 1
      $region12: #{tpu_custom_call.1} parent=5 // pred_fallthru
        _
      %p153 = scmp.lt.s32.totalorder %s18, 4
      // Predicated region
      $region13: #{tpu_custom_call.1} parent=5 // pred_check
        %p154 = pneg %p153
      $region14: #{tpu_custom_call.1} parent=5 // pred_check_branch
        %156 = sbr.rel (%p154) target = $region16
      $region15: #{tpu_custom_call.1} parent=5 // pred_region
        // Predicated region
        $region17: #{tpu_custom_call.1} parent=15 // pred_check
          %p157 = pneg %p38
        $region18: #{tpu_custom_call.1} parent=15 // pred_check_branch
          %159 = sbr.rel (%p157) target = $region20
        $region19: #{tpu_custom_call.1} parent=15 // pred_region
          %s160 = sand.u32 %s28, 1
          %s161 = scalar_lea.sflag [#allocation4], %s160
          %s162 = sand.u32 %s28, 1
          %s163 = smul.addr %s162, 128
          %s164 = scalar_lea.vmem [#allocation3], %s163
          %s165 = smul.u32 8, %s18
          %167 = vsyncadd %s161, 0
          %s168 = smul.addr %s165, 2
          %s169 = smul.addr %s168, 8
          %s170 = scalar_lea.hbm %s0, %s169
          %s171 = sshll.u32 %s170, 4
          %s172 = int_to_ptr.hbm [resolvable:$true] %s171
          %s173 = sshll.u32 %s164, 4
          %s174 = int_to_ptr.vmem [resolvable:$true] %s173
          %179 = dma.hbm_to_vmem [thread:$0]  %s172, 2048, %s174, %s161, 256, 256, 16
        $region20: #{tpu_custom_call.1} parent=15 // pred_fallthru
          _
        // Predicated region
        $region21: #{tpu_custom_call.1} parent=15 // pred_check
          %p180 = pneg %p72
        $region22: #{tpu_custom_call.1} parent=15 // pred_check_branch
          %182 = sbr.rel (%p180) target = $region24
        $region23: #{tpu_custom_call.1} parent=15 // pred_region
          %s183 = sand.u32 %s18, 1
          %s184 = scalar_lea.sflag [#allocation7], %s183
          %s185 = sand.u32 %s62, 1
          %s186 = smul.addr %s185, 16
          %s187 = scalar_lea.vmem [#allocation6], %s186
          %s188 = smul.u32 %s18, 8
          %s189 = ssub.s32 %s188, 1
          %p190 = scmp.gt.s32.totalorder %s189, 0
          %s191 = scalar_select %p190, %s189, 0
          %193 = vsyncadd %s184, 0
          %s194 = smul.addr %s191, 2
          %s195 = smul.addr %s194, 8
          %s196 = scalar_lea.hbm %s1, %s195
          %s198 = sshll.u32 %s196, 4
          %s199 = int_to_ptr.hbm [resolvable:$true] %s198
          %s200 = sshll.u32 %s187, 4
          %s201 = int_to_ptr.vmem [resolvable:$true] %s200
          %203 = dma.hbm_to_vmem [thread:$0]  %s199, 256, %s201, %s184
        $region24: #{tpu_custom_call.1} parent=15 // pred_fallthru
          _
        // Predicated region
        $region25: #{tpu_custom_call.1} parent=15 // pred_check
          %p204 = pneg %p106
        $region26: #{tpu_custom_call.1} parent=15 // pred_check_branch
          %206 = sbr.rel (%p204) target = $region28
        $region27: #{tpu_custom_call.1} parent=15 // pred_region
          %s207 = sand.u32 %s18, 1
          %s208 = scalar_lea.sflag [#allocation7], %s207
          %s209 = sand.u32 %s96, 1
          %s210 = smul.addr %s209, 16
          %s211 = scalar_lea.vmem [#allocation8], %s210
          %s212 = sadd.s32 %s18, 1
          %s213 = smul.u32 %s212, 8
          %p214 = scmp.lt.s32.totalorder %s213, 31
          %s215 = scalar_select %p214, %s213, 31
          %217 = vsyncadd %s208, 0
          %s218 = smul.addr %s215, 2
          %s219 = smul.addr %s218, 8
          %s220 = scalar_lea.hbm %s2, %s219
          %s222 = sshll.u32 %s220, 4
          %s223 = int_to_ptr.hbm [resolvable:$true] %s222
          %s224 = sshll.u32 %s211, 4
          %s225 = int_to_ptr.vmem [resolvable:$true] %s224
          %227 = dma.hbm_to_vmem [thread:$0]  %s223, 256, %s225, %s208
        $region28: #{tpu_custom_call.1} parent=15 // pred_fallthru
          _
      $region16: #{tpu_custom_call.1} parent=5 // pred_fallthru
        _
      %p228 = scmp.le.s32.totalorder 1, %s18
      %p229 = scmp.lt.s32.totalorder %s18, 5
      %p230 = pnand %p228, %p229
      %p231 = pneg %p230
      // Predicated region
      $region29: #{tpu_custom_call.1} parent=5 // pred_check
        _
      $region30: #{tpu_custom_call.1} parent=5 // pred_check_branch
        %233 = sbr.rel (%p230) target = $region32
      $region31: #{tpu_custom_call.1} parent=5 // pred_region
        %s234 = ssub.s32 %s18, 1
        %s235 = sand.u32 %s31, 1
        %s236 = scalar_lea.sflag [#allocation4], %s235
        %s237 = sand.u32 %s31, 1
        %s238 = smul.addr %s237, 128
        %s239 = scalar_lea.vmem [#allocation3], %s238
        // Predicated region
        $region33: #{tpu_custom_call.1} parent=31 // pred_check
          %p240 = pneg %p44
        $region34: #{tpu_custom_call.1} parent=31 // pred_check_branch
          %242 = sbr.rel (%p240) target = $region36
        $region35: #{tpu_custom_call.1} parent=31 // pred_region
          %244 = dma.done %s236, 2048
        $region36: #{tpu_custom_call.1} parent=31 // pred_fallthru
          _
        %s245 = sand.u32 %s23, 1
        %s246 = scalar_lea.sflag [#allocation7], %s245
        %s247 = sand.u32 %s65, 1
        %s248 = smul.addr %s247, 16
        %s249 = scalar_lea.vmem [#allocation6], %s248
        // Predicated region
        $region37: #{tpu_custom_call.1} parent=31 // pred_check
          %p250 = pneg %p78
        $region38: #{tpu_custom_call.1} parent=31 // pred_check_branch
          %252 = sbr.rel (%p250) target = $region40
        $region39: #{tpu_custom_call.1} parent=31 // pred_region
          %254 = dma.done %s246, 256
        $region40: #{tpu_custom_call.1} parent=31 // pred_fallthru
          _
        %s255 = sand.u32 %s23, 1
        %s256 = scalar_lea.sflag [#allocation7], %s255
        %s257 = sand.u32 %s99, 1
        %s258 = smul.addr %s257, 16
        %s259 = scalar_lea.vmem [#allocation8], %s258
        // Predicated region
        $region41: #{tpu_custom_call.1} parent=31 // pred_check
          %p260 = pneg %p112
        $region42: #{tpu_custom_call.1} parent=31 // pred_check_branch
          %262 = sbr.rel (%p260) target = $region44
        $region43: #{tpu_custom_call.1} parent=31 // pred_region
          %264 = dma.done %s256, 256
        $region44: #{tpu_custom_call.1} parent=31 // pred_fallthru
          _
        %s265 = sand.u32 %s31, 1
        %s266 = scalar_lea.sflag [#allocation4], %s265
        %s267 = sand.u32 %s31, 1
        %s268 = smul.addr %s267, 128
        %s269 = scalar_lea.vmem [#allocation3], %s268
        %p270 = pneg %p44
        %p271 = pneg %p41
        %s272 = sand.u32 %s23, 1
        %s273 = scalar_lea.sflag [#allocation7], %s272
        %s274 = sand.u32 %s65, 1
        %s275 = smul.addr %s274, 16
        %s276 = scalar_lea.vmem [#allocation6], %s275
        %p277 = pneg %p78
        %p278 = pneg %p75
        %s279 = sand.u32 %s23, 1
        %s280 = scalar_lea.sflag [#allocation7], %s279
        %s281 = sand.u32 %s99, 1
        %s282 = smul.addr %s281, 16
        %s283 = scalar_lea.vmem [#allocation8], %s282
        %p284 = pneg %p112
        %p285 = pneg %p109
        %p286 = pneg %p138
        %p287 = pneg %p135
        %s288 = sand.u32 %s125, 1
        %s289 = scalar_lea.sflag [#allocation5], %s288
        %s290 = sand.u32 %s125, 1
        %s291 = smul.addr %s290, 128
        %s292 = scalar_lea.vmem [#allocation9], %s291
        %s293 = smul.u32 8, %s23
        %s294 = smul.u32 %s23, 8
        %s295 = ssub.s32 %s294, 1
        %p296 = scmp.gt.s32.totalorder %s295, 0
        %s297 = scalar_select %p296, %s295, 0
        %s298 = sadd.s32 %s23, 1
        %s299 = smul.u32 %s298, 8
        %p300 = scmp.lt.s32.totalorder %s299, 31
        %s301 = scalar_select %p300, %s299, 31
        %s302 = smul.u32 8, %s23
        %v303 = vld [vmem:[%s239] sm:$0xff]
        %v304 = vld [vmem:[%s239 + $0x8] sm:$0xff]
        %v305 = vld [vmem:[%s239 + $0x10] sm:$0xff]
        %v306 = vld [vmem:[%s239 + $0x18] sm:$0xff]
        %v307 = vld [vmem:[%s239 + $0x20] sm:$0xff]
        %v308 = vld [vmem:[%s239 + $0x28] sm:$0xff]
        %v309 = vld [vmem:[%s239 + $0x30] sm:$0xff]
        %v310 = vld [vmem:[%s239 + $0x38] sm:$0xff]
        %v311 = vld [vmem:[%s239 + $0x40] sm:$0xff]
        %v312 = vld [vmem:[%s239 + $0x48] sm:$0xff]
        %v313 = vld [vmem:[%s239 + $0x50] sm:$0xff]
        %v314 = vld [vmem:[%s239 + $0x58] sm:$0xff]
        %v315 = vld [vmem:[%s239 + $0x60] sm:$0xff]
        %v316 = vld [vmem:[%s239 + $0x68] sm:$0xff]
        %v317 = vld [vmem:[%s239 + $0x70] sm:$0xff]
        %v318 = vld [vmem:[%s239 + $0x78] sm:$0xff]
        %319 = vst [vmem:[#allocation2 + $0x10] sm:$0xff] %v303
        %320 = vst [vmem:[#allocation2 + $0x18] sm:$0xff] %v304
        %321 = vst [vmem:[#allocation2 + $0x20] sm:$0xff] %v305
        %322 = vst [vmem:[#allocation2 + $0x28] sm:$0xff] %v306
        %323 = vst [vmem:[#allocation2 + $0x30] sm:$0xff] %v307
        %324 = vst [vmem:[#allocation2 + $0x38] sm:$0xff] %v308
        %325 = vst [vmem:[#allocation2 + $0x40] sm:$0xff] %v309
        %326 = vst [vmem:[#allocation2 + $0x48] sm:$0xff] %v310
        %327 = vst [vmem:[#allocation2 + $0x50] sm:$0xff] %v311
        %328 = vst [vmem:[#allocation2 + $0x58] sm:$0xff] %v312
        %329 = vst [vmem:[#allocation2 + $0x60] sm:$0xff] %v313
        %330 = vst [vmem:[#allocation2 + $0x68] sm:$0xff] %v314
        %331 = vst [vmem:[#allocation2 + $0x70] sm:$0xff] %v315
        %332 = vst [vmem:[#allocation2 + $0x78] sm:$0xff] %v316
        %333 = vst [vmem:[#allocation2 + $0x80] sm:$0xff] %v317
        %334 = vst [vmem:[#allocation2 + $0x88] sm:$0xff] %v318
        %s335 = scalar_lea.vmem %s239, 1 [#allocation3]
        %v336 = vld [vmem:[%s335] ss:$8 sm:$0x3]
        %s337 = scalar_lea.vmem %s249, 7 [#allocation6]
        %v338 = vld [vmem:[%s337] ss:$8 sm:$0x3]
        %p339 = scmp.eq.s32.totalorder %s23, 0
        %s340 = scalar_select %p339, 1, 0
        %v341 = vstv %s340
        %vm342 = vcmp.eq.s32.totalorder %v341, 1
        %v343 = vsel %vm342, %v336, %v338
        %v344 = vlaneseq
        %vm345 = vcmp.ge.s32.totalorder %v344, 0
        %vm346 = vcmp.lt.s32.totalorder %v344, 256
        %vm347 = vmand %vm345, %vm346
        %s348 = scalar_lea.vmem [#allocation2], 7
        %349 = vst.msk [vmem:[%s348] ss:$8 sm:$0x3] %vm347, %v343
        %350 = vst.msk [vmem:[%s348] ss:$8 sm:$0x0] %vm347, %v343
        %s351 = scalar_lea.vmem %s239, 118 [#allocation3]
        %v352 = vld [vmem:[%s351] ss:$8 sm:$0x3]
        %v353 = vld [vmem:[%s259] ss:$8 sm:$0x3]
        %p354 = scmp.eq.s32.totalorder %s23, 3
        %s355 = scalar_select %p354, 1, 0
        %v356 = vstv %s355
        %vm357 = vcmp.eq.s32.totalorder %v356, 1
        %v358 = vsel %vm357, %v352, %v353
        %s359 = scalar_lea.vmem [#allocation2], 144
        %360 = vst.msk [vmem:[%s359] ss:$8 sm:$0x3] %vm347, %v358
        %361 = vst.msk [vmem:[%s359] ss:$8 sm:$0x0] %vm347, %v358
        %v362 = vld [vmem:[#allocation2] sm:$0x80]
        %v363 = vld [vmem:[#allocation2 + $0x8] sm:$0x80]
        %v364 = vld [vmem:[#allocation2 + $0x10] sm:$0xff]
        %v365 = vld [vmem:[#allocation2 + $0x18] sm:$0xff]
        %v366 = vld [vmem:[#allocation2 + $0x20] sm:$0xff]
        %v367 = vld [vmem:[#allocation2 + $0x28] sm:$0xff]
        %v368 = vld [vmem:[#allocation2 + $0x30] sm:$0xff]
        %v369 = vld [vmem:[#allocation2 + $0x38] sm:$0xff]
        %v370 = vld [vmem:[#allocation2 + $0x40] sm:$0xff]
        %v371 = vld [vmem:[#allocation2 + $0x48] sm:$0xff]
        %v372 = vld [vmem:[#allocation2 + $0x50] sm:$0xff]
        %v373 = vld [vmem:[#allocation2 + $0x58] sm:$0xff]
        %v374 = vld [vmem:[#allocation2 + $0x60] sm:$0xff]
        %v375 = vld [vmem:[#allocation2 + $0x68] sm:$0xff]
        %v376 = vld [vmem:[#allocation2 + $0x70] sm:$0xff]
        %v377 = vld [vmem:[#allocation2 + $0x78] sm:$0xff]
        %v378 = vld [vmem:[#allocation2 + $0x80] sm:$0x7f]
        %v379 = vld [vmem:[#allocation2 + $0x88] sm:$0x7f]
        %v380 = vld [vmem:[#allocation2 + $0x80] sm:$0xff]
        %v381 = vld [vmem:[#allocation2 + $0x88] sm:$0xff]
        %vm398 = vcmask 1046528
        %v399 = vrot.slane %v364, 1
        %v400 = vrot.slane %v365, 1
        %v401 = vrot.slane %v366, 1
        %v402 = vsel %vm398, %v399, %v401
        %v403 = vrot.slane %v367, 1
        %v404 = vsel %vm398, %v400, %v403
        %v405 = vrot.slane %v368, 1
        %v406 = vsel %vm398, %v401, %v405
        %v407 = vrot.slane %v369, 1
        %v408 = vsel %vm398, %v403, %v407
        %v409 = vrot.slane %v370, 1
        %v410 = vsel %vm398, %v405, %v409
        %v411 = vrot.slane %v371, 1
        %v412 = vsel %vm398, %v407, %v411
        %v413 = vrot.slane %v372, 1
        %v414 = vsel %vm398, %v409, %v413
        %v415 = vrot.slane %v373, 1
        %v416 = vsel %vm398, %v411, %v415
        %v417 = vrot.slane %v374, 1
        %v418 = vsel %vm398, %v413, %v417
        %v419 = vrot.slane %v375, 1
        %v420 = vsel %vm398, %v415, %v419
        %v421 = vrot.slane %v376, 1
        %v422 = vsel %vm398, %v417, %v421
        %v423 = vrot.slane %v377, 1
        %v424 = vsel %vm398, %v419, %v423
        %v425 = vrot.slane %v380, 1
        %v426 = vsel %vm398, %v421, %v425
        %v427 = vrot.slane %v381, 1
        %v428 = vsel %vm398, %v423, %v427
        %v447 = vadd.f32 %v362, %v399
        %v448 = vadd.f32 %v363, %v400
        %v449 = vadd.f32 %v364, %v402
        %v450 = vadd.f32 %v365, %v404
        %v451 = vadd.f32 %v366, %v406
        %v452 = vadd.f32 %v367, %v408
        %v453 = vadd.f32 %v368, %v410
        %v454 = vadd.f32 %v369, %v412
        %v455 = vadd.f32 %v370, %v414
        %v456 = vadd.f32 %v371, %v416
        %v457 = vadd.f32 %v372, %v418
        %v458 = vadd.f32 %v373, %v420
        %v459 = vadd.f32 %v374, %v422
        %v460 = vadd.f32 %v375, %v424
        %v461 = vadd.f32 %v376, %v426
        %v462 = vadd.f32 %v377, %v428
        %v463 = vadd.f32 %v378, %v425
        %v464 = vadd.f32 %v379, %v427
        %v465 = vld [vmem:[#allocation2 + $0x10] sm:$0xfe]
        %v466 = vld [vmem:[#allocation2 + $0x18] sm:$0xfe]
        %v467 = vld [vmem:[#allocation2 + $0x20] sm:$0xff]
        %v468 = vld [vmem:[#allocation2 + $0x28] sm:$0xff]
        %v469 = vld [vmem:[#allocation2 + $0x30] sm:$0xff]
        %v470 = vld [vmem:[#allocation2 + $0x38] sm:$0xff]
        %v471 = vld [vmem:[#allocation2 + $0x40] sm:$0xff]
        %v472 = vld [vmem:[#allocation2 + $0x48] sm:$0xff]
        %v473 = vld [vmem:[#allocation2 + $0x50] sm:$0xff]
        %v474 = vld [vmem:[#allocation2 + $0x58] sm:$0xff]
        %v475 = vld [vmem:[#allocation2 + $0x60] sm:$0xff]
        %v476 = vld [vmem:[#allocation2 + $0x68] sm:$0xff]
        %v477 = vld [vmem:[#allocation2 + $0x70] sm:$0xff]
        %v478 = vld [vmem:[#allocation2 + $0x78] sm:$0xff]
        %v479 = vld [vmem:[#allocation2 + $0x80] sm:$0xff]
        %v480 = vld [vmem:[#allocation2 + $0x88] sm:$0xff]
        %v481 = vld [vmem:[#allocation2 + $0x90] sm:$0x1]
        %v482 = vld [vmem:[#allocation2 + $0x98] sm:$0x1]
        %vm501 = vcmask 1045504
        %v502 = vrot.slane %v465, 2
        %v503 = vrot.slane %v466, 2
        %v504 = vrot.slane %v467, 2
        %v505 = vsel %vm501, %v502, %v504
        %v506 = vrot.slane %v468, 2
        %v507 = vsel %vm501, %v503, %v506
        %v508 = vrot.slane %v469, 2
        %v509 = vsel %vm501, %v504, %v508
        %v510 = vrot.slane %v470, 2
        %v511 = vsel %vm501, %v506, %v510
        %v512 = vrot.slane %v471, 2
        %v513 = vsel %vm501, %v508, %v512
        %v514 = vrot.slane %v472, 2
        %v515 = vsel %vm501, %v510, %v514
        %v516 = vrot.slane %v473, 2
        %v517 = vsel %vm501, %v512, %v516
        %v518 = vrot.slane %v474, 2
        %v519 = vsel %vm501, %v514, %v518
        %v520 = vrot.slane %v475, 2
        %v521 = vsel %vm501, %v516, %v520
        %v522 = vrot.slane %v476, 2
        %v523 = vsel %vm501, %v518, %v522
        %v524 = vrot.slane %v477, 2
        %v525 = vsel %vm501, %v520, %v524
        %v526 = vrot.slane %v478, 2
        %v527 = vsel %vm501, %v522, %v526
        %v528 = vrot.slane %v479, 2
        %v529 = vsel %vm501, %v524, %v528
        %v530 = vrot.slane %v480, 2
        %v531 = vsel %vm501, %v526, %v530
        %v532 = vrot.slane %v481, 2
        %v533 = vsel %vm501, %v528, %v532
        %v534 = vrot.slane %v482, 2
        %v535 = vsel %vm501, %v530, %v534
        %v554 = vadd.f32 %v447, %v502
        %v555 = vadd.f32 %v448, %v503
        %v556 = vadd.f32 %v449, %v505
        %v557 = vadd.f32 %v450, %v507
        %v558 = vadd.f32 %v451, %v509
        %v559 = vadd.f32 %v452, %v511
        %v560 = vadd.f32 %v453, %v513
        %v561 = vadd.f32 %v454, %v515
        %v562 = vadd.f32 %v455, %v517
        %v563 = vadd.f32 %v456, %v519
        %v564 = vadd.f32 %v457, %v521
        %v565 = vadd.f32 %v458, %v523
        %v566 = vadd.f32 %v459, %v525
        %v567 = vadd.f32 %v460, %v527
        %v568 = vadd.f32 %v461, %v529
        %v569 = vadd.f32 %v462, %v531
        %v570 = vadd.f32 %v463, %v533
        %v571 = vadd.f32 %v464, %v535
        %vm590 = vcmask 1040384
        %v591 = vrot.slane %v554, 7
        %v592 = vrot.slane %v556, 7
        %v593 = vsel %vm590, %v591, %v592
        %v594 = vrot.slane %v555, 7
        %v595 = vrot.slane %v557, 7
        %v596 = vsel %vm590, %v594, %v595
        %v597 = vrot.slane %v558, 7
        %v598 = vsel %vm590, %v592, %v597
        %v599 = vrot.slane %v559, 7
        %v600 = vsel %vm590, %v595, %v599
        %v601 = vrot.slane %v560, 7
        %v602 = vsel %vm590, %v597, %v601
        %v603 = vrot.slane %v561, 7
        %v604 = vsel %vm590, %v599, %v603
        %v605 = vrot.slane %v562, 7
        %v606 = vsel %vm590, %v601, %v605
        %v607 = vrot.slane %v563, 7
        %v608 = vsel %vm590, %v603, %v607
        %v609 = vrot.slane %v564, 7
        %v610 = vsel %vm590, %v605, %v609
        %v611 = vrot.slane %v565, 7
        %v612 = vsel %vm590, %v607, %v611
        %v613 = vrot.slane %v566, 7
        %v614 = vsel %vm590, %v609, %v613
        %v615 = vrot.slane %v567, 7
        %v616 = vsel %vm590, %v611, %v615
        %v617 = vrot.slane %v568, 7
        %v618 = vsel %vm590, %v613, %v617
        %v619 = vrot.slane %v569, 7
        %v620 = vsel %vm590, %v615, %v619
        %v621 = vrot.slane %v570, 7
        %v622 = vsel %vm590, %v617, %v621
        %v623 = vrot.slane %v571, 7
        %v624 = vsel %vm590, %v619, %v623
        %641 = vrot.lane.b32.xlu0 %v593, 1
        %v642 = vpop.permute.xlu0 %641
        %643 = vrot.lane.b32.xlu0 %v598, 1
        %v644 = vpop.permute.xlu0 %643
        %645 = vrot.lane.b32.xlu0 %v602, 1
        %v646 = vpop.permute.xlu0 %645
        %647 = vrot.lane.b32.xlu0 %v606, 1
        %v648 = vpop.permute.xlu0 %647
        %649 = vrot.lane.b32.xlu0 %v610, 1
        %v650 = vpop.permute.xlu0 %649
        %651 = vrot.lane.b32.xlu0 %v614, 1
        %v652 = vpop.permute.xlu0 %651
        %653 = vrot.lane.b32.xlu0 %v618, 1
        %v654 = vpop.permute.xlu0 %653
        %655 = vrot.lane.b32.xlu0 %v622, 1
        %v656 = vpop.permute.xlu0 %655
        %657 = vrot.lane.b32.xlu0 %v596, 1
        %v658 = vpop.permute.xlu0 %657
        %659 = vrot.lane.b32.xlu0 %v600, 1
        %v660 = vpop.permute.xlu0 %659
        %661 = vrot.lane.b32.xlu0 %v604, 1
        %v662 = vpop.permute.xlu0 %661
        %663 = vrot.lane.b32.xlu0 %v608, 1
        %v664 = vpop.permute.xlu0 %663
        %665 = vrot.lane.b32.xlu0 %v612, 1
        %v666 = vpop.permute.xlu0 %665
        %667 = vrot.lane.b32.xlu0 %v616, 1
        %v668 = vpop.permute.xlu0 %667
        %669 = vrot.lane.b32.xlu0 %v620, 1
        %v670 = vpop.permute.xlu0 %669
        %671 = vrot.lane.b32.xlu0 %v624, 1
        %v672 = vpop.permute.xlu0 %671
        %v673 = vlaneseq
        %v674 = vand.u32 %v673, 127
        %vm675 = vcmp.lt.s32.totalorder %v674, 1
        %v676 = vsel %vm675, %v642, %v658
        %v677 = vsel %vm675, %v644, %v660
        %v678 = vsel %vm675, %v646, %v662
        %v679 = vsel %vm675, %v648, %v664
        %v680 = vsel %vm675, %v650, %v666
        %v681 = vsel %vm675, %v652, %v668
        %v682 = vsel %vm675, %v654, %v670
        %v683 = vsel %vm675, %v656, %v672
        %v684 = vsel %vm675, %v658, %v642
        %v685 = vsel %vm675, %v660, %v644
        %v686 = vsel %vm675, %v662, %v646
        %v687 = vsel %vm675, %v664, %v648
        %v688 = vsel %vm675, %v666, %v650
        %v689 = vsel %vm675, %v668, %v652
        %v690 = vsel %vm675, %v670, %v654
        %v691 = vsel %vm675, %v672, %v656
        %v708 = vrot.slane %v684, 1
        %v709 = vrot.slane %v676, 1
        %v710 = vrot.slane %v685, 1
        %v711 = vsel %vm398, %v708, %v710
        %v712 = vrot.slane %v677, 1
        %v713 = vsel %vm398, %v709, %v712
        %v714 = vrot.slane %v686, 1
        %v715 = vsel %vm398, %v710, %v714
        %v716 = vrot.slane %v678, 1
        %v717 = vsel %vm398, %v712, %v716
        %v718 = vrot.slane %v687, 1
        %v719 = vsel %vm398, %v714, %v718
        %v720 = vrot.slane %v679, 1
        %v721 = vsel %vm398, %v716, %v720
        %v722 = vrot.slane %v688, 1
        %v723 = vsel %vm398, %v718, %v722
        %v724 = vrot.slane %v680, 1
        %v725 = vsel %vm398, %v720, %v724
        %v726 = vrot.slane %v689, 1
        %v727 = vsel %vm398, %v722, %v726
        %v728 = vrot.slane %v681, 1
        %v729 = vsel %vm398, %v724, %v728
        %v730 = vrot.slane %v690, 1
        %v731 = vsel %vm398, %v726, %v730
        %v732 = vrot.slane %v682, 1
        %v733 = vsel %vm398, %v728, %v732
        %v734 = vrot.slane %v691, 1
        %v735 = vsel %vm398, %v730, %v734
        %v736 = vrot.slane %v683, 1
        %v737 = vsel %vm398, %v732, %v736
        %v756 = vadd.f32 %v554, %v708
        %v757 = vadd.f32 %v555, %v709
        %v758 = vadd.f32 %v556, %v711
        %v759 = vadd.f32 %v557, %v713
        %v760 = vadd.f32 %v558, %v715
        %v761 = vadd.f32 %v559, %v717
        %v762 = vadd.f32 %v560, %v719
        %v763 = vadd.f32 %v561, %v721
        %v764 = vadd.f32 %v562, %v723
        %v765 = vadd.f32 %v563, %v725
        %v766 = vadd.f32 %v564, %v727
        %v767 = vadd.f32 %v565, %v729
        %v768 = vadd.f32 %v566, %v731
        %v769 = vadd.f32 %v567, %v733
        %v770 = vadd.f32 %v568, %v735
        %v771 = vadd.f32 %v569, %v737
        %v772 = vadd.f32 %v570, %v734
        %v773 = vadd.f32 %v571, %v736
        %774 = vrot.lane.b32.xlu0 %v593, 127
        %v775 = vpop.permute.xlu0 %774
        %776 = vrot.lane.b32.xlu0 %v598, 127
        %v777 = vpop.permute.xlu0 %776
        %778 = vrot.lane.b32.xlu0 %v602, 127
        %v779 = vpop.permute.xlu0 %778
        %780 = vrot.lane.b32.xlu0 %v606, 127
        %v781 = vpop.permute.xlu0 %780
        %782 = vrot.lane.b32.xlu0 %v610, 127
        %v783 = vpop.permute.xlu0 %782
        %784 = vrot.lane.b32.xlu0 %v614, 127
        %v785 = vpop.permute.xlu0 %784
        %786 = vrot.lane.b32.xlu0 %v618, 127
        %v787 = vpop.permute.xlu0 %786
        %788 = vrot.lane.b32.xlu0 %v622, 127
        %v789 = vpop.permute.xlu0 %788
        %790 = vrot.lane.b32.xlu0 %v596, 127
        %v791 = vpop.permute.xlu0 %790
        %792 = vrot.lane.b32.xlu0 %v600, 127
        %v793 = vpop.permute.xlu0 %792
        %794 = vrot.lane.b32.xlu0 %v604, 127
        %v795 = vpop.permute.xlu0 %794
        %796 = vrot.lane.b32.xlu0 %v608, 127
        %v797 = vpop.permute.xlu0 %796
        %798 = vrot.lane.b32.xlu0 %v612, 127
        %v799 = vpop.permute.xlu0 %798
        %800 = vrot.lane.b32.xlu0 %v616, 127
        %v801 = vpop.permute.xlu0 %800
        %802 = vrot.lane.b32.xlu0 %v620, 127
        %v803 = vpop.permute.xlu0 %802
        %804 = vrot.lane.b32.xlu0 %v624, 127
        %v805 = vpop.permute.xlu0 %804
        %vm806 = vcmp.lt.s32.totalorder %v674, 127
        %v807 = vsel %vm806, %v775, %v791
        %v808 = vsel %vm806, %v777, %v793
        %v809 = vsel %vm806, %v779, %v795
        %v810 = vsel %vm806, %v781, %v797
        %v811 = vsel %vm806, %v783, %v799
        %v812 = vsel %vm806, %v785, %v801
        %v813 = vsel %vm806, %v787, %v803
        %v814 = vsel %vm806, %v789, %v805
        %v815 = vsel %vm806, %v791, %v775
        %v816 = vsel %vm806, %v793, %v777
        %v817 = vsel %vm806, %v795, %v779
        %v818 = vsel %vm806, %v797, %v781
        %v819 = vsel %vm806, %v799, %v783
        %v820 = vsel %vm806, %v801, %v785
        %v821 = vsel %vm806, %v803, %v787
        %v822 = vsel %vm806, %v805, %v789
        %v839 = vrot.slane %v807, 1
        %v840 = vrot.slane %v815, 1
        %v841 = vrot.slane %v808, 1
        %v842 = vsel %vm398, %v839, %v841
        %v843 = vrot.slane %v816, 1
        %v844 = vsel %vm398, %v840, %v843
        %v845 = vrot.slane %v809, 1
        %v846 = vsel %vm398, %v841, %v845
        %v847 = vrot.slane %v817, 1
        %v848 = vsel %vm398, %v843, %v847
        %v849 = vrot.slane %v810, 1
        %v850 = vsel %vm398, %v845, %v849
        %v851 = vrot.slane %v818, 1
        %v852 = vsel %vm398, %v847, %v851
        %v853 = vrot.slane %v811, 1
        %v854 = vsel %vm398, %v849, %v853
        %v855 = vrot.slane %v819, 1
        %v856 = vsel %vm398, %v851, %v855
        %v857 = vrot.slane %v812, 1
        %v858 = vsel %vm398, %v853, %v857
        %v859 = vrot.slane %v820, 1
        %v860 = vsel %vm398, %v855, %v859
        %v861 = vrot.slane %v813, 1
        %v862 = vsel %vm398, %v857, %v861
        %v863 = vrot.slane %v821, 1
        %v864 = vsel %vm398, %v859, %v863
        %v865 = vrot.slane %v814, 1
        %v866 = vsel %vm398, %v861, %v865
        %v867 = vrot.slane %v822, 1
        %v868 = vsel %vm398, %v863, %v867
        %v887 = vadd.f32 %v756, %v839
        %v888 = vadd.f32 %v757, %v840
        %v889 = vadd.f32 %v758, %v842
        %v890 = vadd.f32 %v759, %v844
        %v891 = vadd.f32 %v760, %v846
        %v892 = vadd.f32 %v761, %v848
        %v893 = vadd.f32 %v762, %v850
        %v894 = vadd.f32 %v763, %v852
        %v895 = vadd.f32 %v764, %v854
        %v896 = vadd.f32 %v765, %v856
        %v897 = vadd.f32 %v766, %v858
        %v898 = vadd.f32 %v767, %v860
        %v899 = vadd.f32 %v768, %v862
        %v900 = vadd.f32 %v769, %v864
        %v901 = vadd.f32 %v770, %v866
        %v902 = vadd.f32 %v771, %v868
        %v903 = vadd.f32 %v772, %v865
        %v904 = vadd.f32 %v773, %v867
        %v905 = vmul.f32 %v887, 0.11111111
        %v906 = vmul.f32 %v888, 0.11111111
        %v907 = vmul.f32 %v889, 0.11111111
        %v908 = vmul.f32 %v890, 0.11111111
        %v909 = vmul.f32 %v891, 0.11111111
        %v910 = vmul.f32 %v892, 0.11111111
        %v911 = vmul.f32 %v893, 0.11111111
        %v912 = vmul.f32 %v894, 0.11111111
        %v913 = vmul.f32 %v895, 0.11111111
        %v914 = vmul.f32 %v896, 0.11111111
        %v915 = vmul.f32 %v897, 0.11111111
        %v916 = vmul.f32 %v898, 0.11111111
        %v917 = vmul.f32 %v899, 0.11111111
        %v918 = vmul.f32 %v900, 0.11111111
        %v919 = vmul.f32 %v901, 0.11111111
        %v920 = vmul.f32 %v902, 0.11111111
        %v921 = vmul.f32 %v903, 0.11111111
        %v922 = vmul.f32 %v904, 0.11111111
        %v941 = vrot.slane %v905, 7
        %v942 = vrot.slane %v907, 7
        %v943 = vsel %vm590, %v941, %v942
        %v944 = vrot.slane %v906, 7
        %v945 = vrot.slane %v908, 7
        %v946 = vsel %vm590, %v944, %v945
        %v947 = vrot.slane %v909, 7
        %v948 = vsel %vm590, %v942, %v947
        %v949 = vrot.slane %v910, 7
        %v950 = vsel %vm590, %v945, %v949
        %v951 = vrot.slane %v911, 7
        %v952 = vsel %vm590, %v947, %v951
        %v953 = vrot.slane %v912, 7
        %v954 = vsel %vm590, %v949, %v953
        %v955 = vrot.slane %v913, 7
        %v956 = vsel %vm590, %v951, %v955
        %v957 = vrot.slane %v914, 7
        %v958 = vsel %vm590, %v953, %v957
        %v959 = vrot.slane %v915, 7
        %v960 = vsel %vm590, %v955, %v959
        %v961 = vrot.slane %v916, 7
        %v962 = vsel %vm590, %v957, %v961
        %v963 = vrot.slane %v917, 7
        %v964 = vsel %vm590, %v959, %v963
        %v965 = vrot.slane %v918, 7
        %v966 = vsel %vm590, %v961, %v965
        %v967 = vrot.slane %v919, 7
        %v968 = vsel %vm590, %v963, %v967
        %v969 = vrot.slane %v920, 7
        %v970 = vsel %vm590, %v965, %v969
        %v971 = vrot.slane %v921, 7
        %v972 = vsel %vm590, %v967, %v971
        %v973 = vrot.slane %v922, 7
        %v974 = vsel %vm590, %v969, %v973
        %991 = vst [vmem:[%s292] sm:$0xff] %v943
        %992 = vst [vmem:[%s292 + $0x8] sm:$0xff] %v946
        %993 = vst [vmem:[%s292 + $0x10] sm:$0xff] %v948
        %994 = vst [vmem:[%s292 + $0x18] sm:$0xff] %v950
        %995 = vst [vmem:[%s292 + $0x20] sm:$0xff] %v952
        %996 = vst [vmem:[%s292 + $0x28] sm:$0xff] %v954
        %997 = vst [vmem:[%s292 + $0x30] sm:$0xff] %v956
        %998 = vst [vmem:[%s292 + $0x38] sm:$0xff] %v958
        %999 = vst [vmem:[%s292 + $0x40] sm:$0xff] %v960
        %1000 = vst [vmem:[%s292 + $0x48] sm:$0xff] %v962
        %1001 = vst [vmem:[%s292 + $0x50] sm:$0xff] %v964
        %1002 = vst [vmem:[%s292 + $0x58] sm:$0xff] %v966
        %1003 = vst [vmem:[%s292 + $0x60] sm:$0xff] %v968
        %1004 = vst [vmem:[%s292 + $0x68] sm:$0xff] %v970
        %1005 = vst [vmem:[%s292 + $0x70] sm:$0xff] %v972
        %1006 = vst [vmem:[%s292 + $0x78] sm:$0xff] %v974
        %1007 = vrot.lane.b32.xlu0 %v554, 1
        %v1008 = vpop.permute.xlu0 %1007
        %1009 = vrot.lane.b32.xlu0 %v556, 1
        %v1010 = vpop.permute.xlu0 %1009
        %1011 = vrot.lane.b32.xlu0 %v558, 1
        %v1012 = vpop.permute.xlu0 %1011
        %1013 = vrot.lane.b32.xlu0 %v560, 1
        %v1014 = vpop.permute.xlu0 %1013
        %1015 = vrot.lane.b32.xlu0 %v562, 1
        %v1016 = vpop.permute.xlu0 %1015
        %1017 = vrot.lane.b32.xlu0 %v564, 1
        %v1018 = vpop.permute.xlu0 %1017
        %1019 = vrot.lane.b32.xlu0 %v566, 1
        %v1020 = vpop.permute.xlu0 %1019
        %1021 = vrot.lane.b32.xlu0 %v568, 1
        %v1022 = vpop.permute.xlu0 %1021
        %1023 = vrot.lane.b32.xlu0 %v570, 1
        %v1024 = vpop.permute.xlu0 %1023
        %v1034 = vadd.f32 %v554, %v1008
        %v1035 = vadd.f32 %v556, %v1010
        %v1036 = vadd.f32 %v558, %v1012
        %v1037 = vadd.f32 %v560, %v1014
        %v1038 = vadd.f32 %v562, %v1016
        %v1039 = vadd.f32 %v564, %v1018
        %v1040 = vadd.f32 %v566, %v1020
        %v1041 = vadd.f32 %v568, %v1022
        %v1042 = vadd.f32 %v570, %v1024
        %v1043 = vadd.f32 %v1034, %v554
        %v1044 = vadd.f32 %v1035, %v556
        %v1045 = vadd.f32 %v1036, %v558
        %v1046 = vadd.f32 %v1037, %v560
        %v1047 = vadd.f32 %v1038, %v562
        %v1048 = vadd.f32 %v1039, %v564
        %v1049 = vadd.f32 %v1040, %v566
        %v1050 = vadd.f32 %v1041, %v568
        %v1051 = vadd.f32 %v1042, %v570
        %v1052 = vmul.f32 %v1043, 0.11111111
        %v1053 = vmul.f32 %v1044, 0.11111111
        %v1054 = vmul.f32 %v1045, 0.11111111
        %v1055 = vmul.f32 %v1046, 0.11111111
        %v1056 = vmul.f32 %v1047, 0.11111111
        %v1057 = vmul.f32 %v1048, 0.11111111
        %v1058 = vmul.f32 %v1049, 0.11111111
        %v1059 = vmul.f32 %v1050, 0.11111111
        %v1060 = vmul.f32 %v1051, 0.11111111
        %v1070 = vrot.slane %v1052, 7
        %v1071 = vrot.slane %v1053, 7
        %v1072 = vsel %vm590, %v1070, %v1071
        %v1073 = vrot.slane %v1054, 7
        %v1074 = vsel %vm590, %v1071, %v1073
        %v1075 = vrot.slane %v1055, 7
        %v1076 = vsel %vm590, %v1073, %v1075
        %v1077 = vrot.slane %v1056, 7
        %v1078 = vsel %vm590, %v1075, %v1077
        %v1079 = vrot.slane %v1057, 7
        %v1080 = vsel %vm590, %v1077, %v1079
        %v1081 = vrot.slane %v1058, 7
        %v1082 = vsel %vm590, %v1079, %v1081
        %v1083 = vrot.slane %v1059, 7
        %v1084 = vsel %vm590, %v1081, %v1083
        %v1085 = vrot.slane %v1060, 7
        %v1086 = vsel %vm590, %v1083, %v1085
        %1087 = vrot.lane.b32.xlu0 %v1072, 127
        %v1088 = vpop.permute.xlu0 %1087
        %1089 = vrot.lane.b32.xlu0 %v1074, 127
        %v1090 = vpop.permute.xlu0 %1089
        %1091 = vrot.lane.b32.xlu0 %v1076, 127
        %v1092 = vpop.permute.xlu0 %1091
        %1093 = vrot.lane.b32.xlu0 %v1078, 127
        %v1094 = vpop.permute.xlu0 %1093
        %1095 = vrot.lane.b32.xlu0 %v1080, 127
        %v1096 = vpop.permute.xlu0 %1095
        %1097 = vrot.lane.b32.xlu0 %v1082, 127
        %v1098 = vpop.permute.xlu0 %1097
        %1099 = vrot.lane.b32.xlu0 %v1084, 127
        %v1100 = vpop.permute.xlu0 %1099
        %1101 = vrot.lane.b32.xlu0 %v1086, 127
        %v1102 = vpop.permute.xlu0 %1101
        %vm1111 = vcmask 7168
        %1112 = vst.msk [vmem:[%s292] sm:$0xff] %vm1111, %v1088
        %1113 = vst.msk [vmem:[%s292 + $0x10] sm:$0xff] %vm1111, %v1090
        %1114 = vst.msk [vmem:[%s292 + $0x20] sm:$0xff] %vm1111, %v1092
        %1115 = vst.msk [vmem:[%s292 + $0x30] sm:$0xff] %vm1111, %v1094
        %1116 = vst.msk [vmem:[%s292 + $0x40] sm:$0xff] %vm1111, %v1096
        %1117 = vst.msk [vmem:[%s292 + $0x50] sm:$0xff] %vm1111, %v1098
        %1118 = vst.msk [vmem:[%s292 + $0x60] sm:$0xff] %vm1111, %v1100
        %1119 = vst.msk [vmem:[%s292 + $0x70] sm:$0xff] %vm1111, %v1102
        %1120 = vrot.lane.b32.xlu0 %v555, 127
        %v1121 = vpop.permute.xlu0 %1120
        %1122 = vrot.lane.b32.xlu0 %v557, 127
        %v1123 = vpop.permute.xlu0 %1122
        %1124 = vrot.lane.b32.xlu0 %v559, 127
        %v1125 = vpop.permute.xlu0 %1124
        %1126 = vrot.lane.b32.xlu0 %v561, 127
        %v1127 = vpop.permute.xlu0 %1126
        %1128 = vrot.lane.b32.xlu0 %v563, 127
        %v1129 = vpop.permute.xlu0 %1128
        %1130 = vrot.lane.b32.xlu0 %v565, 127
        %v1131 = vpop.permute.xlu0 %1130
        %1132 = vrot.lane.b32.xlu0 %v567, 127
        %v1133 = vpop.permute.xlu0 %1132
        %1134 = vrot.lane.b32.xlu0 %v569, 127
        %v1135 = vpop.permute.xlu0 %1134
        %1136 = vrot.lane.b32.xlu0 %v571, 127
        %v1137 = vpop.permute.xlu0 %1136
        %v1147 = vadd.f32 %v555, %v1121
        %v1148 = vadd.f32 %v557, %v1123
        %v1149 = vadd.f32 %v559, %v1125
        %v1150 = vadd.f32 %v561, %v1127
        %v1151 = vadd.f32 %v563, %v1129
        %v1152 = vadd.f32 %v565, %v1131
        %v1153 = vadd.f32 %v567, %v1133
        %v1154 = vadd.f32 %v569, %v1135
        %v1155 = vadd.f32 %v571, %v1137
        %v1156 = vadd.f32 %v1147, %v555
        %v1157 = vadd.f32 %v1148, %v557
        %v1158 = vadd.f32 %v1149, %v559
        %v1159 = vadd.f32 %v1150, %v561
        %v1160 = vadd.f32 %v1151, %v563
        %v1161 = vadd.f32 %v1152, %v565
        %v1162 = vadd.f32 %v1153, %v567
        %v1163 = vadd.f32 %v1154, %v569
        %v1164 = vadd.f32 %v1155, %v571
        %v1165 = vmul.f32 %v1156, 0.11111111
        %v1166 = vmul.f32 %v1157, 0.11111111
        %v1167 = vmul.f32 %v1158, 0.11111111
        %v1168 = vmul.f32 %v1159, 0.11111111
        %v1169 = vmul.f32 %v1160, 0.11111111
        %v1170 = vmul.f32 %v1161, 0.11111111
        %v1171 = vmul.f32 %v1162, 0.11111111
        %v1172 = vmul.f32 %v1163, 0.11111111
        %v1173 = vmul.f32 %v1164, 0.11111111
        %v1183 = vrot.slane %v1165, 7
        %v1184 = vrot.slane %v1166, 7
        %v1185 = vsel %vm590, %v1183, %v1184
        %v1186 = vrot.slane %v1167, 7
        %v1187 = vsel %vm590, %v1184, %v1186
        %v1188 = vrot.slane %v1168, 7
        %v1189 = vsel %vm590, %v1186, %v1188
        %v1190 = vrot.slane %v1169, 7
        %v1191 = vsel %vm590, %v1188, %v1190
        %v1192 = vrot.slane %v1170, 7
        %v1193 = vsel %vm590, %v1190, %v1192
        %v1194 = vrot.slane %v1171, 7
        %v1195 = vsel %vm590, %v1192, %v1194
        %v1196 = vrot.slane %v1172, 7
        %v1197 = vsel %vm590, %v1194, %v1196
        %v1198 = vrot.slane %v1173, 7
        %v1199 = vsel %vm590, %v1196, %v1198
        %1200 = vrot.lane.b32.xlu0 %v1185, 1
        %v1201 = vpop.permute.xlu0 %1200
        %1202 = vrot.lane.b32.xlu0 %v1187, 1
        %v1203 = vpop.permute.xlu0 %1202
        %1204 = vrot.lane.b32.xlu0 %v1189, 1
        %v1205 = vpop.permute.xlu0 %1204
        %1206 = vrot.lane.b32.xlu0 %v1191, 1
        %v1207 = vpop.permute.xlu0 %1206
        %1208 = vrot.lane.b32.xlu0 %v1193, 1
        %v1209 = vpop.permute.xlu0 %1208
        %1210 = vrot.lane.b32.xlu0 %v1195, 1
        %v1211 = vpop.permute.xlu0 %1210
        %1212 = vrot.lane.b32.xlu0 %v1197, 1
        %v1213 = vpop.permute.xlu0 %1212
        %1214 = vrot.lane.b32.xlu0 %v1199, 1
        %v1215 = vpop.permute.xlu0 %1214
        %vm1224 = vcmask 1048568
        %1225 = vst.msk [vmem:[%s292 + $0x8] sm:$0xff] %vm1224, %v1201
        %1226 = vst.msk [vmem:[%s292 + $0x18] sm:$0xff] %vm1224, %v1203
        %1227 = vst.msk [vmem:[%s292 + $0x28] sm:$0xff] %vm1224, %v1205
        %1228 = vst.msk [vmem:[%s292 + $0x38] sm:$0xff] %vm1224, %v1207
        %1229 = vst.msk [vmem:[%s292 + $0x48] sm:$0xff] %vm1224, %v1209
        %1230 = vst.msk [vmem:[%s292 + $0x58] sm:$0xff] %vm1224, %v1211
        %1231 = vst.msk [vmem:[%s292 + $0x68] sm:$0xff] %vm1224, %v1213
        %1232 = vst.msk [vmem:[%s292 + $0x78] sm:$0xff] %vm1224, %v1215
        %s1233 = sand.u32 %s125, 1
        %s1234 = scalar_lea.sflag [#allocation5], %s1233
        %s1235 = sand.u32 %s125, 1
        %s1236 = smul.addr %s1235, 128
        %s1237 = scalar_lea.vmem [#allocation9], %s1236
        // Predicated region
        $region45: #{tpu_custom_call.1} parent=31 // pred_check
          %p1238 = pneg %p135
        $region46: #{tpu_custom_call.1} parent=31 // pred_check_branch
          %1240 = sbr.rel (%p1238) target = $region48
        $region47: #{tpu_custom_call.1} parent=31 // pred_region
          %s1241 = smul.u32 8, %s23
          %1243 = vsyncadd %s1234, 0
          %s1244 = smul.addr %s1241, 2
          %s1245 = smul.addr %s1244, 8
          %s1246 = scalar_lea.hbm %s3, %s1245
          %s1247 = sshll.u32 %s1237, 4
          %s1248 = int_to_ptr.vmem [resolvable:$true] %s1247
          %s1249 = sshll.u32 %s1246, 4
          %s1250 = int_to_ptr.hbm [resolvable:$true] %s1249
          %1255 = dma.vmem_to_hbm [thread:$0]  %s1248, 2048, %s1250, %s1234, 256, 256, 16
        $region48: #{tpu_custom_call.1} parent=31 // pred_fallthru
          _
      $region32: #{tpu_custom_call.1} parent=5 // pred_fallthru
        _
      %p1256 = scmp.le.s32.totalorder 2, %s18
      // Predicated region
      $region49: #{tpu_custom_call.1} parent=5 // pred_check
        %p1257 = pneg %p1256
      $region50: #{tpu_custom_call.1} parent=5 // pred_check_branch
        %1259 = sbr.rel (%p1257) target = $region52
      $region51: #{tpu_custom_call.1} parent=5 // pred_region
        %s1260 = ssub.s32 %s18, 2
        // Predicated region
        $region53: #{tpu_custom_call.1} parent=51 // pred_check
          %p1261 = pneg %p141
        $region54: #{tpu_custom_call.1} parent=51 // pred_check_branch
          %1263 = sbr.rel (%p1261) target = $region56
        $region55: #{tpu_custom_call.1} parent=51 // pred_region
          %s1264 = sand.u32 %s126, 1
          %s1265 = scalar_lea.sflag [#allocation5], %s1264
          %s1266 = sand.u32 %s126, 1
          %s1267 = smul.addr %s1266, 128
          %s1268 = scalar_lea.vmem [#allocation9], %s1267
          %1270 = dma.done %s1265, 2048
        $region56: #{tpu_custom_call.1} parent=51 // pred_fallthru
          _
      $region52: #{tpu_custom_call.1} parent=5 // pred_fallthru
        _
    $region6: #{tpu_custom_call.1} parent=1 // loop_footer
      %s22 = sadd.s32 1, %s18
    $region7: #{tpu_custom_call.1} parent=1 // loop_footer_branch
      %17 = sbr.rel target = $region3
    $region8: #{tpu_custom_call.1} parent=1 // loop_exit
      _
    %1271 = vsyncpa [#allocation4], 1
    %s1272 = scalar_lea.sflag [#allocation4], 1
    %1273 = vsyncpa %s1272, 1
    %1274 = vsyncpa [#allocation7], 1
    %s1275 = scalar_lea.sflag [#allocation7], 1
    %1276 = vsyncpa %s1275, 1
    %1277 = vsyncpa [#allocation5], 1
    %s1278 = scalar_lea.sflag [#allocation5], 1
    %1279 = vsyncpa %s1278, 1

</llo_original>
